<compile_context>
chip_gen: v7x
topology: tpu7x:2x2x1
jax: 0.10.0
libtpu: 0.0.40
codegen_flags: <defaults>
</compile_context>

<pallas_src>
import jax
import jax.numpy as jnp
from jax.experimental import pallas as pl
from jax.experimental.pallas import tpu as pltpu

EPS = 1e-5
HIDDEN = (64, 32, 16)
LANES = 128


def _layer_dims(input_feature, output_feature):
    dims = []
    din = input_feature
    for dout in HIDDEN:
        dims.append((din, dout))
        din = dout
    dims.append((din, output_feature))
    return dims


def init_params(key, input_feature, output_feature):
    """PyTorch-style init. Linear weights stored as (in, out) so kernel does x @ W."""
    params = {}
    for i, (din, dout) in enumerate(_layer_dims(input_feature, output_feature), start=1):
        key, kw, kb = jax.random.split(key, 3)
        bound = 1.0 / jnp.sqrt(din)
        params[f"w{i}"] = jax.random.uniform(kw, (din, dout), jnp.float32, -bound, bound)
        params[f"b{i}"] = jax.random.uniform(kb, (1, dout), jnp.float32, -bound, bound)
        if i < 4:
            params[f"g{i}"] = jnp.ones((1, dout), jnp.float32)
            params[f"be{i}"] = jnp.zeros((1, dout), jnp.float32)
    return params


def pack_params(params, input_feature, output_feature):
    """One-time packing of all kernel parameters into two lane-dense slabs."""
    dims = _layer_dims(input_feature, output_feature)

    def pad_to(a, rows, cols):
        a = a.astype(jnp.float32)
        return jnp.pad(a, ((0, rows - a.shape[0]), (0, cols - a.shape[1])))

    # Layer 1 keeps its true input row count (x is not padded); layers 2..4
    # take the full 128-lane (zero-padded) hidden activation as input.
    w_rows = [dims[0][0]] + [LANES] * 3
    blocks, offs, off = [], [], 0
    for i, rows in enumerate(w_rows, start=1):
        blocks.append(pad_to(params[f"w{i}"], rows, LANES))
        offs.append(off)
        off += rows
    w_slab = jnp.concatenate(blocks, axis=0)                    # (416, 128)

    vec_rows = [params["g1"], params["be1"],
                params["g2"], params["be2"],
                params["g3"], params["be3"],
                params["b4"],
                jnp.zeros((1, LANES), jnp.float32)]             # pad to 8 sublanes
    vec_slab = jnp.concatenate([pad_to(v, 1, LANES) for v in vec_rows], axis=0)  # (8,128)
    return w_slab, vec_slab, tuple(offs), tuple(w_rows)


def _make_kernel(batch, offs, w_rows, output_feature):
    inv_b = 1.0 / float(batch)

    def kernel(x_ref, w_ref, v_ref, o_ref):
        def bn_relu(h, g_row):
            # Train-mode BatchNorm1d with biased batch stats (two-pass, f32).
            g = v_ref[g_row:g_row + 1, :]
            b = v_ref[g_row + 1:g_row + 2, :]
            mu = jnp.sum(h, axis=0, keepdims=True) * inv_b
            d = h - mu
            var = jnp.sum(d * d, axis=0, keepdims=True) * inv_b
            # Padded lanes: h == 0, gamma == beta == 0 -> output stays 0.
            return jnp.maximum(d * (g * jax.lax.rsqrt(var + EPS)) + b, 0.0)

        h = x_ref[...]                                          # (B, input_feature)
        for layer in range(3):
            w = w_ref[offs[layer]:offs[layer] + w_rows[layer], :]
            # Linear bias omitted: it cancels exactly under BN mean subtraction.
            h = jnp.dot(h, w, preferred_element_type=jnp.float32)   # (B, 128)
            h = bn_relu(h, 2 * layer)

        w4 = w_ref[offs[3]:offs[3] + w_rows[3], :]
        logits = jnp.dot(h, w4, preferred_element_type=jnp.float32) + v_ref[6:7, :]
        # Only the first `output_feature` lanes are real; the (B, out) store is
        # a tiny masked vst -- negligible at this size.
        o_ref[...] = jax.nn.sigmoid(logits)[:, :output_feature]

    return kernel


def mlp_forward(x, w_slab, vec_slab, offs, w_rows, output_feature):
    batch = x.shape[0]
    kernel = _make_kernel(batch, offs, w_rows, output_feature)
    vmem = pl.BlockSpec(memory_space=pltpu.MemorySpace.VMEM)
    return pl.pallas_call(
        kernel,
        out_shape=jax.ShapeDtypeStruct((batch, output_feature), jnp.float32),
        in_specs=[vmem, vmem, vmem],
        out_specs=vmem,
    )(x, w_slab, vec_slab)


def mlp_reference(x, p):
    """Faithful reference for the PyTorch module (with b1..b3, full BN)."""
    def bn_relu(h, g, b):
        mu = jnp.mean(h, axis=0, keepdims=True)
        var = jnp.mean((h - mu) ** 2, axis=0, keepdims=True)
        return jnp.maximum((h - mu) / jnp.sqrt(var + EPS) * g + b, 0.0)

    h = bn_relu(x @ p["w1"] + p["b1"], p["g1"], p["be1"])
    h = bn_relu(h @ p["w2"] + p["b2"], p["g2"], p["be2"])
    h = bn_relu(h @ p["w3"] + p["b3"], p["g3"], p["be3"])
    return jax.nn.sigmoid(h @ p["w4"] + p["b4"])


if __name__ == "__main__":
    INPUT_FEATURE = 32
    OUTPUT_FEATURE = 8
    BATCH = 8

    key = jax.random.PRNGKey(0)
    key, kx = jax.random.split(key)
    x = jax.random.normal(kx, (BATCH, INPUT_FEATURE), jnp.float32)
    params = init_params(key, INPUT_FEATURE, OUTPUT_FEATURE)
    w_slab, vec_slab, offs, w_rows = pack_params(params, INPUT_FEATURE, OUTPUT_FEATURE)

    out = mlp_forward(x, w_slab, vec_slab, offs, w_rows, OUTPUT_FEATURE)
    out = jax.block_until_ready(out)

    ref = mlp_reference(x, params)
    assert out.shape == (BATCH, OUTPUT_FEATURE)
    # Slightly looser than 1e-5: b1..b3 are cancelled algebraically (not
    # numerically identically) before BN.
    err = float(jnp.max(jnp.abs(out - ref)))
    assert jnp.allclose(out, ref, atol=1e-4, rtol=1e-4), err

    print("KERNEL_OK")
</pallas_src>

<mosaic_0001>
module attributes {stable_mosaic.version = 11 : i64} {
  func.func @kernel(%arg0: memref<8x32xf32, #tpu.memory_space<vmem>>, %arg1: memref<416x128xf32, #tpu.memory_space<vmem>>, %arg2: memref<8x128xf32, #tpu.memory_space<vmem>>, %arg3: memref<8x8xf32, #tpu.memory_space<vmem>>) attributes {dimension_semantics = [], scalar_prefetch = 0 : i64, scratch_operands = 0 : i64, tpu.core_type = #tpu.core_type<tc>} {
    %c0 = arith.constant 0 : index
    %c0_0 = arith.constant 0 : index
    %0 = vector.load %arg0[%c0, %c0_0] : memref<8x32xf32, #tpu.memory_space<vmem>>, vector<8x32xf32>
    %c0_1 = arith.constant 0 : index
    %c0_2 = arith.constant 0 : index
    %1 = vector.load %arg1[%c0_1, %c0_2] : memref<416x128xf32, #tpu.memory_space<vmem>>, vector<32x128xf32>
    %cst = arith.constant dense<0.000000e+00> : vector<8x128xf32>
    %2 = tpu.matmul %0, %1, %cst {dimension_numbers = #tpu.dot_dimension_numbers<[1], [0], [0], [1], [0, 0, 1, 1], [], []>} : vector<8x32xf32>, vector<32x128xf32>, vector<8x128xf32> -> vector<8x128xf32>
    %c0_3 = arith.constant 0 : index
    %c0_4 = arith.constant 0 : index
    %3 = vector.load %arg2[%c0_3, %c0_4] : memref<8x128xf32, #tpu.memory_space<vmem>>, vector<1x128xf32>
    %c1 = arith.constant 1 : index
    %c0_5 = arith.constant 0 : index
    %4 = vector.load %arg2[%c1, %c0_5] : memref<8x128xf32, #tpu.memory_space<vmem>>, vector<1x128xf32>
    %cst_6 = arith.constant dense<0.000000e+00> : vector<128xf32>
    %5 = vector.multi_reduction <add>, %2, %cst_6 [0] : vector<8x128xf32> to vector<128xf32>
    %6 = vector.shape_cast %5 : vector<128xf32> to vector<1x128xf32>
    %cst_7 = arith.constant 1.250000e-01 : f32
    %7 = vector.broadcast %cst_7 : f32 to vector<1x128xf32>
    %8 = arith.mulf %6, %7 : vector<1x128xf32>
    %9 = vector.broadcast %8 : vector<1x128xf32> to vector<8x128xf32>
    %10 = arith.subf %2, %9 : vector<8x128xf32>
    %11 = arith.mulf %10, %10 : vector<8x128xf32>
    %cst_8 = arith.constant dense<0.000000e+00> : vector<128xf32>
    %12 = vector.multi_reduction <add>, %11, %cst_8 [0] : vector<8x128xf32> to vector<128xf32>
    %13 = vector.shape_cast %12 : vector<128xf32> to vector<1x128xf32>
    %cst_9 = arith.constant 1.250000e-01 : f32
    %14 = vector.broadcast %cst_9 : f32 to vector<1x128xf32>
    %15 = arith.mulf %13, %14 : vector<1x128xf32>
    %cst_10 = arith.constant 9.99999974E-6 : f32
    %16 = vector.broadcast %cst_10 : f32 to vector<1x128xf32>
    %17 = arith.addf %15, %16 : vector<1x128xf32>
    %18 = math.rsqrt %17 : vector<1x128xf32>
    %19 = arith.mulf %3, %18 : vector<1x128xf32>
    %20 = vector.broadcast %19 : vector<1x128xf32> to vector<8x128xf32>
    %21 = arith.mulf %10, %20 : vector<8x128xf32>
    %22 = vector.broadcast %4 : vector<1x128xf32> to vector<8x128xf32>
    %23 = arith.addf %21, %22 : vector<8x128xf32>
    %cst_11 = arith.constant 0.000000e+00 : f32
    %24 = vector.broadcast %cst_11 : f32 to vector<8x128xf32>
    %25 = arith.maximumf %23, %24 : vector<8x128xf32>
    %c32 = arith.constant 32 : index
    %c0_12 = arith.constant 0 : index
    %26 = vector.load %arg1[%c32, %c0_12] : memref<416x128xf32, #tpu.memory_space<vmem>>, vector<128x128xf32>
    %cst_13 = arith.constant dense<0.000000e+00> : vector<8x128xf32>
    %27 = tpu.matmul %25, %26, %cst_13 {dimension_numbers = #tpu.dot_dimension_numbers<[1], [0], [0], [1], [0, 0, 1, 1], [], []>} : vector<8x128xf32>, vector<128x128xf32>, vector<8x128xf32> -> vector<8x128xf32>
    %c2 = arith.constant 2 : index
    %c0_14 = arith.constant 0 : index
    %28 = vector.load %arg2[%c2, %c0_14] : memref<8x128xf32, #tpu.memory_space<vmem>>, vector<1x128xf32>
    %c3 = arith.constant 3 : index
    %c0_15 = arith.constant 0 : index
    %29 = vector.load %arg2[%c3, %c0_15] : memref<8x128xf32, #tpu.memory_space<vmem>>, vector<1x128xf32>
    %cst_16 = arith.constant dense<0.000000e+00> : vector<128xf32>
    %30 = vector.multi_reduction <add>, %27, %cst_16 [0] : vector<8x128xf32> to vector<128xf32>
    %31 = vector.shape_cast %30 : vector<128xf32> to vector<1x128xf32>
    %cst_17 = arith.constant 1.250000e-01 : f32
    %32 = vector.broadcast %cst_17 : f32 to vector<1x128xf32>
    %33 = arith.mulf %31, %32 : vector<1x128xf32>
    %34 = vector.broadcast %33 : vector<1x128xf32> to vector<8x128xf32>
    %35 = arith.subf %27, %34 : vector<8x128xf32>
    %36 = arith.mulf %35, %35 : vector<8x128xf32>
    %cst_18 = arith.constant dense<0.000000e+00> : vector<128xf32>
    %37 = vector.multi_reduction <add>, %36, %cst_18 [0] : vector<8x128xf32> to vector<128xf32>
    %38 = vector.shape_cast %37 : vector<128xf32> to vector<1x128xf32>
    %cst_19 = arith.constant 1.250000e-01 : f32
    %39 = vector.broadcast %cst_19 : f32 to vector<1x128xf32>
    %40 = arith.mulf %38, %39 : vector<1x128xf32>
    %cst_20 = arith.constant 9.99999974E-6 : f32
    %41 = vector.broadcast %cst_20 : f32 to vector<1x128xf32>
    %42 = arith.addf %40, %41 : vector<1x128xf32>
    %43 = math.rsqrt %42 : vector<1x128xf32>
    %44 = arith.mulf %28, %43 : vector<1x128xf32>
    %45 = vector.broadcast %44 : vector<1x128xf32> to vector<8x128xf32>
    %46 = arith.mulf %35, %45 : vector<8x128xf32>
    %47 = vector.broadcast %29 : vector<1x128xf32> to vector<8x128xf32>
    %48 = arith.addf %46, %47 : vector<8x128xf32>
    %cst_21 = arith.constant 0.000000e+00 : f32
    %49 = vector.broadcast %cst_21 : f32 to vector<8x128xf32>
    %50 = arith.maximumf %48, %49 : vector<8x128xf32>
    %c160 = arith.constant 160 : index
    %c0_22 = arith.constant 0 : index
    %51 = vector.load %arg1[%c160, %c0_22] : memref<416x128xf32, #tpu.memory_space<vmem>>, vector<128x128xf32>
    %cst_23 = arith.constant dense<0.000000e+00> : vector<8x128xf32>
    %52 = tpu.matmul %50, %51, %cst_23 {dimension_numbers = #tpu.dot_dimension_numbers<[1], [0], [0], [1], [0, 0, 1, 1], [], []>} : vector<8x128xf32>, vector<128x128xf32>, vector<8x128xf32> -> vector<8x128xf32>
    %c4 = arith.constant 4 : index
    %c0_24 = arith.constant 0 : index
    %53 = vector.load %arg2[%c4, %c0_24] : memref<8x128xf32, #tpu.memory_space<vmem>>, vector<1x128xf32>
    %c5 = arith.constant 5 : index
    %c0_25 = arith.constant 0 : index
    %54 = vector.load %arg2[%c5, %c0_25] : memref<8x128xf32, #tpu.memory_space<vmem>>, vector<1x128xf32>
    %cst_26 = arith.constant dense<0.000000e+00> : vector<128xf32>
    %55 = vector.multi_reduction <add>, %52, %cst_26 [0] : vector<8x128xf32> to vector<128xf32>
    %56 = vector.shape_cast %55 : vector<128xf32> to vector<1x128xf32>
    %cst_27 = arith.constant 1.250000e-01 : f32
    %57 = vector.broadcast %cst_27 : f32 to vector<1x128xf32>
    %58 = arith.mulf %56, %57 : vector<1x128xf32>
    %59 = vector.broadcast %58 : vector<1x128xf32> to vector<8x128xf32>
    %60 = arith.subf %52, %59 : vector<8x128xf32>
    %61 = arith.mulf %60, %60 : vector<8x128xf32>
    %cst_28 = arith.constant dense<0.000000e+00> : vector<128xf32>
    %62 = vector.multi_reduction <add>, %61, %cst_28 [0] : vector<8x128xf32> to vector<128xf32>
    %63 = vector.shape_cast %62 : vector<128xf32> to vector<1x128xf32>
    %cst_29 = arith.constant 1.250000e-01 : f32
    %64 = vector.broadcast %cst_29 : f32 to vector<1x128xf32>
    %65 = arith.mulf %63, %64 : vector<1x128xf32>
    %cst_30 = arith.constant 9.99999974E-6 : f32
    %66 = vector.broadcast %cst_30 : f32 to vector<1x128xf32>
    %67 = arith.addf %65, %66 : vector<1x128xf32>
    %68 = math.rsqrt %67 : vector<1x128xf32>
    %69 = arith.mulf %53, %68 : vector<1x128xf32>
    %70 = vector.broadcast %69 : vector<1x128xf32> to vector<8x128xf32>
    %71 = arith.mulf %60, %70 : vector<8x128xf32>
    %72 = vector.broadcast %54 : vector<1x128xf32> to vector<8x128xf32>
    %73 = arith.addf %71, %72 : vector<8x128xf32>
    %cst_31 = arith.constant 0.000000e+00 : f32
    %74 = vector.broadcast %cst_31 : f32 to vector<8x128xf32>
    %75 = arith.maximumf %73, %74 : vector<8x128xf32>
    %c288 = arith.constant 288 : index
    %c0_32 = arith.constant 0 : index
    %76 = vector.load %arg1[%c288, %c0_32] : memref<416x128xf32, #tpu.memory_space<vmem>>, vector<128x128xf32>
    %cst_33 = arith.constant dense<0.000000e+00> : vector<8x128xf32>
    %77 = tpu.matmul %75, %76, %cst_33 {dimension_numbers = #tpu.dot_dimension_numbers<[1], [0], [0], [1], [0, 0, 1, 1], [], []>} : vector<8x128xf32>, vector<128x128xf32>, vector<8x128xf32> -> vector<8x128xf32>
    %c6 = arith.constant 6 : index
    %c0_34 = arith.constant 0 : index
    %78 = vector.load %arg2[%c6, %c0_34] : memref<8x128xf32, #tpu.memory_space<vmem>>, vector<1x128xf32>
    %79 = vector.broadcast %78 : vector<1x128xf32> to vector<8x128xf32>
    %80 = arith.addf %77, %79 : vector<8x128xf32>
    %81 = arith.negf %80 : vector<8x128xf32>
    %82 = math.exp %81 : vector<8x128xf32>
    %cst_35 = arith.constant 1.000000e+00 : f32
    %83 = vector.broadcast %cst_35 : f32 to vector<8x128xf32>
    %84 = arith.addf %83, %82 : vector<8x128xf32>
    %85 = arith.divf %83, %84 : vector<8x128xf32>
    %86 = vector.extract_strided_slice %85 {offsets = [0, 0], sizes = [8, 8], strides = [1, 1]} : vector<8x128xf32> to vector<8x8xf32>
    %c0_36 = arith.constant 0 : index
    %c0_37 = arith.constant 0 : index
    %87 = vector.load %arg3[%c0_36, %c0_37] : memref<8x8xf32, #tpu.memory_space<vmem>>, vector<8x8xf32>
    tpu.vector_store %arg3[%c0_36, %c0_37], %86 {strides = array<i32>} : memref<8x8xf32, #tpu.memory_space<vmem>>, vector<8x8xf32>,
    return
  }
}

</mosaic_0001>

<llo_original>
// kernel: tpu_custom_call.1
$region0: #{tpu_custom_call.1}
  #allocation0 [shape = 'u32[]', space=smem, size = 0x4, offset = 0x4, fixed_abs, tag = 'smem constant byte address 0x4 - core index']
  #allocation1 [shape = 'u32[144,128]{1,0:T(1,128)}', space=vmem, size = 0x12000, scoped, tag = 'internal scratch']
  %s0 = inlined_call_operand.hbm [shape: f32[8,32], index: 0, kind: input, shape index: {}]
  %s1 = inlined_call_operand.hbm [shape: f32[416,128], index: 1, kind: input, shape index: {}]
  %s2 = inlined_call_operand.hbm [shape: f32[8,128], index: 2, kind: input, shape index: {}]
  %s3 = inlined_call_operand.hbm [shape: f32[8,8], index: 3, kind: output, shape index: {}]
  %s4 = sld [smem:[#allocation0]]
  $region34: #{tpu_custom_call.1} parent=0
    _
  %s6 = ssub.s32 1, %s4
  %s7 = scalar_select 0, %s6, %s4
  $region1: #{tpu_custom_call.1} parent=0
    #allocation2 [shape = 'u8[4096]{0}', space=vmem, size = 0x1000, scoped, tag = 'input window, operand 0, single buffered']
    #allocation3 [shape = 's32[1]{0}', space=sflag, size = 0x4, scoped, tag = 'scoped memory for tpu_custom_call.1']
    #allocation4 [shape = 's32[1]{0}', space=sflag, size = 0x4, scoped, tag = 'scoped memory for tpu_custom_call.1']
    #allocation5 [shape = 'u8[212992]{0}', space=vmem, size = 0x34000, scoped, tag = 'input window, operand 1, single buffered']
    #allocation6 [shape = 's32[1]{0}', space=sflag, size = 0x4, scoped, tag = 'scoped memory for tpu_custom_call.1']
    #allocation7 [shape = 'u8[4096]{0}', space=vmem, size = 0x1000, scoped, tag = 'input window, operand 2, single buffered']
    #allocation8 [shape = 'u8[4096]{0}', space=vmem, size = 0x1000, scoped, tag = 'output window, operand 0, single buffered']
    %8 = vsyncpa [#allocation3], 0
    %9 = vsyncpa [#allocation6], 0
    %10 = vsyncpa [#allocation4], 0
    // Predicated region
    $region2: #{tpu_custom_call.1} parent=1 // pred_check
      _
    $region3: #{tpu_custom_call.1} parent=1 // pred_check_branch
      %12 = sbr.rel (0) target = $region5
    $region4: #{tpu_custom_call.1} parent=1 // pred_region
      %s14 = ssub.s32 128, 128
      %15 = vsyncadd [#allocation3], %s14
      %s17 = sshll.u32 [#allocation2], 4
      %s18 = int_to_ptr.vmem [resolvable:$true] %s17
      %20 = dma.hbm_to_vmem [thread:$0]  %s0, 128, %s18, [#allocation3]
    $region5: #{tpu_custom_call.1} parent=1 // pred_fallthru
      _
    // Predicated region
    $region6: #{tpu_custom_call.1} parent=1 // pred_check
      _
    $region7: #{tpu_custom_call.1} parent=1 // pred_check_branch
      %22 = sbr.rel (0) target = $region9
    $region8: #{tpu_custom_call.1} parent=1 // pred_region
      %s24 = ssub.s32 6656, 6656
      %25 = vsyncadd [#allocation6], %s24
      %s26 = sshll.u32 [#allocation5], 4
      %s27 = int_to_ptr.vmem [resolvable:$true] %s26
      %32 = dma.hbm_to_vmem [thread:$0]  %s1, 6656, %s27, [#allocation6], 128, 128, 8
    $region9: #{tpu_custom_call.1} parent=1 // pred_fallthru
      _
    // Predicated region
    $region10: #{tpu_custom_call.1} parent=1 // pred_check
      _
    $region11: #{tpu_custom_call.1} parent=1 // pred_check_branch
      %34 = sbr.rel (0) target = $region13
    $region12: #{tpu_custom_call.1} parent=1 // pred_region
      %s36 = ssub.s32 128, 128
      %37 = vsyncadd [#allocation6], %s36
      %s39 = sshll.u32 [#allocation7], 4
      %s40 = int_to_ptr.vmem [resolvable:$true] %s39
      %42 = dma.hbm_to_vmem [thread:$0]  %s2, 128, %s40, [#allocation6]
    $region13: #{tpu_custom_call.1} parent=1 // pred_fallthru
      _
    // Predicated region
    $region14: #{tpu_custom_call.1} parent=1 // pred_check
      _
    $region15: #{tpu_custom_call.1} parent=1 // pred_check_branch
      %44 = sbr.rel (0) target = $region17
    $region16: #{tpu_custom_call.1} parent=1 // pred_region
      %45 = dma.done [#allocation3], 128
    $region17: #{tpu_custom_call.1} parent=1 // pred_fallthru
      _
    // Predicated region
    $region18: #{tpu_custom_call.1} parent=1 // pred_check
      _
    $region19: #{tpu_custom_call.1} parent=1 // pred_check_branch
      %47 = sbr.rel (0) target = $region21
    $region20: #{tpu_custom_call.1} parent=1 // pred_region
      %48 = dma.done [#allocation6], 6656
    $region21: #{tpu_custom_call.1} parent=1 // pred_fallthru
      _
    // Predicated region
    $region22: #{tpu_custom_call.1} parent=1 // pred_check
      _
    $region23: #{tpu_custom_call.1} parent=1 // pred_check_branch
      %50 = sbr.rel (0) target = $region25
    $region24: #{tpu_custom_call.1} parent=1 // pred_region
      %51 = dma.done [#allocation6], 128
    $region25: #{tpu_custom_call.1} parent=1 // pred_fallthru
      _
    %v52 = vld [vmem:[#allocation2] sm:$0xff]
    %v53 = vld [vmem:[#allocation5] sm:$0xff]
    %v54 = vld [vmem:[#allocation5 + $0x8] sm:$0xff]
    %v55 = vld [vmem:[#allocation5 + $0x10] sm:$0xff]
    %v56 = vld [vmem:[#allocation5 + $0x18] sm:$0xff]
    %vm57 = vcmask 261120
    %v59 = vsel %vm57, %v52, 0
    %61 = vmatprep.subr.mxu0 0.0
    %62 = vmatpush1.msra.mxu0 %v53
    %63 = vmatprep.subr.mxu0 0.0
    %64 = vmatpush1.msra.mxu0 %v54
    %65 = vmatprep.subr.mxu0 0.0
    %66 = vmatpush1.msra.mxu0 %v55
    %67 = vmatprep.subr.mxu0 0.0
    %68 = vmatpush1.msra.mxu0 %v56
    %69 = vmatprep.subr.mxu0 0.0
    %70 = vmatpush1.msra.mxu0 0.0
    %71 = vmatprep.subr.mxu0 0.0
    %72 = vmatpush1.msra.mxu0 0.0
    %73 = vmatprep.subr.mxu0 0.0
    %74 = vmatpush1.msra.mxu0 0.0
    %75 = vmatprep.subr.mxu0 0.0
    %76 = vmatpush1.msra.mxu0 0.0
    %77 = vmatprep.subr.mxu0 0.0
    %78 = vmatpush1.msra.mxu0 0.0
    %79 = vmatprep.subr.mxu0 0.0
    %80 = vmatpush1.msra.mxu0 0.0
    %81 = vmatprep.subr.mxu0 0.0
    %82 = vmatpush1.msra.mxu0 0.0
    %83 = vmatprep.subr.mxu0 0.0
    %84 = vmatpush1.msra.mxu0 0.0
    %85 = vmatprep.subr.mxu0 0.0
    %86 = vmatpush1.msra.mxu0 0.0
    %87 = vmatprep.subr.mxu0 0.0
    %88 = vmatpush1.msra.mxu0 0.0
    %89 = vmatprep.subr.mxu0 0.0
    %90 = vmatpush1.msra.mxu0 0.0
    %91 = vmatprep.subr.mxu0 0.0
    %92 = vmatpush1.msra.mxu0 0.0
    %93 = vmatprep.subr.mxu0 0.0
    %94 = vmatpush1.msra.mxu0 0.0
    %95 = vmatprep.subr.mxu0 0.0
    %96 = vmatpush1.msra.mxu0 0.0
    %97 = vmatprep.subr.mxu0 0.0
    %98 = vmatpush1.msra.mxu0 0.0
    %99 = vmatprep.subr.mxu0 0.0
    %100 = vmatpush1.msra.mxu0 0.0
    %101 = vmatprep.subr.mxu0 0.0
    %102 = vmatpush1.msra.mxu0 0.0
    %103 = vmatprep.subr.mxu0 0.0
    %104 = vmatpush1.msra.mxu0 0.0
    %105 = vmatprep.subr.mxu0 0.0
    %106 = vmatpush1.msra.mxu0 0.0
    %107 = vmatprep.subr.mxu0 0.0
    %108 = vmatpush1.msra.mxu0 0.0
    %109 = vmatprep.subr.mxu0 0.0
    %110 = vmatpush1.msra.mxu0 0.0
    %111 = vmatprep.subr.mxu0 0.0
    %112 = vmatpush1.msra.mxu0 0.0
    %113 = vmatprep.subr.mxu0 0.0
    %114 = vmatpush1.msra.mxu0 0.0
    %115 = vmatprep.subr.mxu0 0.0
    %116 = vmatpush1.msra.mxu0 0.0
    %117 = vmatprep.subr.mxu0 0.0
    %118 = vmatpush1.msra.mxu0 0.0
    %119 = vmatprep.subr.mxu0 0.0
    %120 = vmatpush1.msra.mxu0 0.0
    %121 = vmatprep.subr.mxu0 0.0
    %122 = vmatpush1.msra.mxu0 0.0
    %123 = vmatprep.subr.mxu0 0.0
    %124 = vmatpush1.msra.mxu0 0.0
    %125 = vmatprep.mubr.f32.mxu0 0.0
    %126 = vmatmul.mubr.f32.gmra.mrb[0].mxu0 %v59
    %v127 = vpop.f32.mrb[0].mxu0
    %v128 = vadd.f32 0.0, %v127
    %v129 = vpop.f32.mrb[0].mxu0
    %130 = vdwg.mxu0
    %v131 = vld [vmem:[#allocation7] sm:$0x1]
    %v132 = vld [vmem:[#allocation7 + $0x1] sm:$0x1]
    %v133 = vrot.slane %v128, 4
    %v134 = vadd.f32 %v128, %v133
    %v135 = vrot.slane %v134, 2
    %v136 = vadd.f32 %v134, %v135
    %v137 = vrot.slane %v136, 1
    %v138 = vadd.f32 %v136, %v137
    %v139 = vmul.f32 %v138, 0.125
    %v140 = vsub.f32 %v128, %v139
    %v141 = vmul.f32 %v140, %v140
    %v142 = vrot.slane %v141, 4
    %v143 = vadd.f32 %v141, %v142
    %v144 = vrot.slane %v143, 2
    %v145 = vadd.f32 %v143, %v144
    %v146 = vrot.slane %v145, 1
    %v147 = vadd.f32 %v145, %v146
    %v148 = vmul.f32 %v147, 0.125
    %v149 = vadd.f32 %v148, 1e-05
    %v150 = vrsqrt.pop %v149
    %v151 = vmul.f32 %v131, %v150
    %v152 = vlaneseq
    %v153 = vshrl.u32 %v152, 7
    %v154 = vsub.s32 0, %v153
    %v155 = vrot.slane %v151, %v154
    %v156 = vmul.f32 %v140, %v155
    %v157 = vlaneseq
    %v158 = vshrl.u32 %v157, 7
    %v159 = vsub.s32 0, %v158
    %v160 = vrot.slane %v132, %v159
    %v161 = vadd.f32 %v156, %v160
    %v162 = vmax.f32 %v161, 0.0
    %v163 = vld [vmem:[#allocation5 + $0x20] sm:$0xff]
    %v164 = vld [vmem:[#allocation5 + $0x28] sm:$0xff]
    %v165 = vld [vmem:[#allocation5 + $0x30] sm:$0xff]
    %v166 = vld [vmem:[#allocation5 + $0x38] sm:$0xff]
    %v167 = vld [vmem:[#allocation5 + $0x40] sm:$0xff]
    %v168 = vld [vmem:[#allocation5 + $0x48] sm:$0xff]
    %v169 = vld [vmem:[#allocation5 + $0x50] sm:$0xff]
    %v170 = vld [vmem:[#allocation5 + $0x58] sm:$0xff]
    %v171 = vld [vmem:[#allocation5 + $0x60] sm:$0xff]
    %v172 = vld [vmem:[#allocation5 + $0x68] sm:$0xff]
    %v173 = vld [vmem:[#allocation5 + $0x70] sm:$0xff]
    %v174 = vld [vmem:[#allocation5 + $0x78] sm:$0xff]
    %v175 = vld [vmem:[#allocation5 + $0x80] sm:$0xff]
    %v176 = vld [vmem:[#allocation5 + $0x88] sm:$0xff]
    %v177 = vld [vmem:[#allocation5 + $0x90] sm:$0xff]
    %v178 = vld [vmem:[#allocation5 + $0x98] sm:$0xff]
    %179 = vmatprep.subr.mxu0 0.0
    %180 = vmatpush1.msra.mxu0 %v163
    %181 = vmatprep.subr.mxu0 0.0
    %182 = vmatpush1.msra.mxu0 %v164
    %183 = vmatprep.subr.mxu0 0.0
    %184 = vmatpush1.msra.mxu0 %v165
    %185 = vmatprep.subr.mxu0 0.0
    %186 = vmatpush1.msra.mxu0 %v166
    %187 = vmatprep.subr.mxu0 0.0
    %188 = vmatpush1.msra.mxu0 %v167
    %189 = vmatprep.subr.mxu0 0.0
    %190 = vmatpush1.msra.mxu0 %v168
    %191 = vmatprep.subr.mxu0 0.0
    %192 = vmatpush1.msra.mxu0 %v169
    %193 = vmatprep.subr.mxu0 0.0
    %194 = vmatpush1.msra.mxu0 %v170
    %195 = vmatprep.subr.mxu0 0.0
    %196 = vmatpush1.msra.mxu0 %v171
    %197 = vmatprep.subr.mxu0 0.0
    %198 = vmatpush1.msra.mxu0 %v172
    %199 = vmatprep.subr.mxu0 0.0
    %200 = vmatpush1.msra.mxu0 %v173
    %201 = vmatprep.subr.mxu0 0.0
    %202 = vmatpush1.msra.mxu0 %v174
    %203 = vmatprep.subr.mxu0 0.0
    %204 = vmatpush1.msra.mxu0 %v175
    %205 = vmatprep.subr.mxu0 0.0
    %206 = vmatpush1.msra.mxu0 %v176
    %207 = vmatprep.subr.mxu0 0.0
    %208 = vmatpush1.msra.mxu0 %v177
    %209 = vmatprep.subr.mxu0 0.0
    %210 = vmatpush1.msra.mxu0 %v178
    %211 = vmatprep.subr.mxu0 0.0
    %212 = vmatpush1.msra.mxu0 0.0
    %213 = vmatprep.subr.mxu0 0.0
    %214 = vmatpush1.msra.mxu0 0.0
    %215 = vmatprep.subr.mxu0 0.0
    %216 = vmatpush1.msra.mxu0 0.0
    %217 = vmatprep.subr.mxu0 0.0
    %218 = vmatpush1.msra.mxu0 0.0
    %219 = vmatprep.subr.mxu0 0.0
    %220 = vmatpush1.msra.mxu0 0.0
    %221 = vmatprep.subr.mxu0 0.0
    %222 = vmatpush1.msra.mxu0 0.0
    %223 = vmatprep.subr.mxu0 0.0
    %224 = vmatpush1.msra.mxu0 0.0
    %225 = vmatprep.subr.mxu0 0.0
    %226 = vmatpush1.msra.mxu0 0.0
    %227 = vmatprep.subr.mxu0 0.0
    %228 = vmatpush1.msra.mxu0 0.0
    %229 = vmatprep.subr.mxu0 0.0
    %230 = vmatpush1.msra.mxu0 0.0
    %231 = vmatprep.subr.mxu0 0.0
    %232 = vmatpush1.msra.mxu0 0.0
    %233 = vmatprep.subr.mxu0 0.0
    %234 = vmatpush1.msra.mxu0 0.0
    %235 = vmatprep.subr.mxu0 0.0
    %236 = vmatpush1.msra.mxu0 0.0
    %237 = vmatprep.subr.mxu0 0.0
    %238 = vmatpush1.msra.mxu0 0.0
    %239 = vmatprep.subr.mxu0 0.0
    %240 = vmatpush1.msra.mxu0 0.0
    %241 = vmatprep.subr.mxu0 0.0
    %242 = vmatpush1.msra.mxu0 0.0
    %243 = vmatprep.mubr.f32.mxu0 0.0
    %244 = vmatmul.mubr.f32.gmra.mrb[0].mxu0 %v162
    %v245 = vpop.f32.mrb[0].mxu0
    %v246 = vadd.f32 0.0, %v245
    %v247 = vpop.f32.mrb[0].mxu0
    %248 = vdwg.mxu0
    %v249 = vld [vmem:[#allocation7 + $0x2] sm:$0x1]
    %v250 = vld [vmem:[#allocation7 + $0x3] sm:$0x1]
    %v251 = vrot.slane %v246, 4
    %v252 = vadd.f32 %v246, %v251
    %v253 = vrot.slane %v252, 2
    %v254 = vadd.f32 %v252, %v253
    %v255 = vrot.slane %v254, 1
    %v256 = vadd.f32 %v254, %v255
    %v257 = vmul.f32 %v256, 0.125
    %v258 = vsub.f32 %v246, %v257
    %v259 = vmul.f32 %v258, %v258
    %v260 = vrot.slane %v259, 4
    %v261 = vadd.f32 %v259, %v260
    %v262 = vrot.slane %v261, 2
    %v263 = vadd.f32 %v261, %v262
    %v264 = vrot.slane %v263, 1
    %v265 = vadd.f32 %v263, %v264
    %v266 = vmul.f32 %v265, 0.125
    %v267 = vadd.f32 %v266, 1e-05
    %v268 = vrsqrt.pop %v267
    %v269 = vmul.f32 %v249, %v268
    %v270 = vlaneseq
    %v271 = vshrl.u32 %v270, 7
    %v272 = vsub.s32 0, %v271
    %v273 = vrot.slane %v269, %v272
    %v274 = vmul.f32 %v258, %v273
    %v275 = vlaneseq
    %v276 = vshrl.u32 %v275, 7
    %v277 = vsub.s32 0, %v276
    %v278 = vrot.slane %v250, %v277
    %v279 = vadd.f32 %v274, %v278
    %v280 = vmax.f32 %v279, 0.0
    %v281 = vld [vmem:[#allocation5 + $0xa0] sm:$0xff]
    %v282 = vld [vmem:[#allocation5 + $0xa8] sm:$0xff]
    %v283 = vld [vmem:[#allocation5 + $0xb0] sm:$0xff]
    %v284 = vld [vmem:[#allocation5 + $0xb8] sm:$0xff]
    %v285 = vld [vmem:[#allocation5 + $0xc0] sm:$0xff]
    %v286 = vld [vmem:[#allocation5 + $0xc8] sm:$0xff]
    %v287 = vld [vmem:[#allocation5 + $0xd0] sm:$0xff]
    %v288 = vld [vmem:[#allocation5 + $0xd8] sm:$0xff]
    %v289 = vld [vmem:[#allocation5 + $0xe0] sm:$0xff]
    %v290 = vld [vmem:[#allocation5 + $0xe8] sm:$0xff]
    %v291 = vld [vmem:[#allocation5 + $0xf0] sm:$0xff]
    %v292 = vld [vmem:[#allocation5 + $0xf8] sm:$0xff]
    %v293 = vld [vmem:[#allocation5 + $0x100] sm:$0xff]
    %v294 = vld [vmem:[#allocation5 + $0x108] sm:$0xff]
    %v295 = vld [vmem:[#allocation5 + $0x110] sm:$0xff]
    %v296 = vld [vmem:[#allocation5 + $0x118] sm:$0xff]
    %297 = vmatprep.subr.mxu0 0.0
    %298 = vmatpush1.msra.mxu0 %v281
    %299 = vmatprep.subr.mxu0 0.0
    %300 = vmatpush1.msra.mxu0 %v282
    %301 = vmatprep.subr.mxu0 0.0
    %302 = vmatpush1.msra.mxu0 %v283
    %303 = vmatprep.subr.mxu0 0.0
    %304 = vmatpush1.msra.mxu0 %v284
    %305 = vmatprep.subr.mxu0 0.0
    %306 = vmatpush1.msra.mxu0 %v285
    %307 = vmatprep.subr.mxu0 0.0
    %308 = vmatpush1.msra.mxu0 %v286
    %309 = vmatprep.subr.mxu0 0.0
    %310 = vmatpush1.msra.mxu0 %v287
    %311 = vmatprep.subr.mxu0 0.0
    %312 = vmatpush1.msra.mxu0 %v288
    %313 = vmatprep.subr.mxu0 0.0
    %314 = vmatpush1.msra.mxu0 %v289
    %315 = vmatprep.subr.mxu0 0.0
    %316 = vmatpush1.msra.mxu0 %v290
    %317 = vmatprep.subr.mxu0 0.0
    %318 = vmatpush1.msra.mxu0 %v291
    %319 = vmatprep.subr.mxu0 0.0
    %320 = vmatpush1.msra.mxu0 %v292
    %321 = vmatprep.subr.mxu0 0.0
    %322 = vmatpush1.msra.mxu0 %v293
    %323 = vmatprep.subr.mxu0 0.0
    %324 = vmatpush1.msra.mxu0 %v294
    %325 = vmatprep.subr.mxu0 0.0
    %326 = vmatpush1.msra.mxu0 %v295
    %327 = vmatprep.subr.mxu0 0.0
    %328 = vmatpush1.msra.mxu0 %v296
    %329 = vmatprep.subr.mxu0 0.0
    %330 = vmatpush1.msra.mxu0 0.0
    %331 = vmatprep.subr.mxu0 0.0
    %332 = vmatpush1.msra.mxu0 0.0
    %333 = vmatprep.subr.mxu0 0.0
    %334 = vmatpush1.msra.mxu0 0.0
    %335 = vmatprep.subr.mxu0 0.0
    %336 = vmatpush1.msra.mxu0 0.0
    %337 = vmatprep.subr.mxu0 0.0
    %338 = vmatpush1.msra.mxu0 0.0
    %339 = vmatprep.subr.mxu0 0.0
    %340 = vmatpush1.msra.mxu0 0.0
    %341 = vmatprep.subr.mxu0 0.0
    %342 = vmatpush1.msra.mxu0 0.0
    %343 = vmatprep.subr.mxu0 0.0
    %344 = vmatpush1.msra.mxu0 0.0
    %345 = vmatprep.subr.mxu0 0.0
    %346 = vmatpush1.msra.mxu0 0.0
    %347 = vmatprep.subr.mxu0 0.0
    %348 = vmatpush1.msra.mxu0 0.0
    %349 = vmatprep.subr.mxu0 0.0
    %350 = vmatpush1.msra.mxu0 0.0
    %351 = vmatprep.subr.mxu0 0.0
    %352 = vmatpush1.msra.mxu0 0.0
    %353 = vmatprep.subr.mxu0 0.0
    %354 = vmatpush1.msra.mxu0 0.0
    %355 = vmatprep.subr.mxu0 0.0
    %356 = vmatpush1.msra.mxu0 0.0
    %357 = vmatprep.subr.mxu0 0.0
    %358 = vmatpush1.msra.mxu0 0.0
    %359 = vmatprep.subr.mxu0 0.0
    %360 = vmatpush1.msra.mxu0 0.0
    %361 = vmatprep.mubr.f32.mxu0 0.0
    %362 = vmatmul.mubr.f32.gmra.mrb[0].mxu0 %v280
    %v363 = vpop.f32.mrb[0].mxu0
    %v364 = vadd.f32 0.0, %v363
    %v365 = vpop.f32.mrb[0].mxu0
    %366 = vdwg.mxu0
    %v367 = vld [vmem:[#allocation7 + $0x4] sm:$0x1]
    %v368 = vld [vmem:[#allocation7 + $0x5] sm:$0x1]
    %v369 = vrot.slane %v364, 4
    %v370 = vadd.f32 %v364, %v369
    %v371 = vrot.slane %v370, 2
    %v372 = vadd.f32 %v370, %v371
    %v373 = vrot.slane %v372, 1
    %v374 = vadd.f32 %v372, %v373
    %v375 = vmul.f32 %v374, 0.125
    %v376 = vsub.f32 %v364, %v375
    %v377 = vmul.f32 %v376, %v376
    %v378 = vrot.slane %v377, 4
    %v379 = vadd.f32 %v377, %v378
    %v380 = vrot.slane %v379, 2
    %v381 = vadd.f32 %v379, %v380
    %v382 = vrot.slane %v381, 1
    %v383 = vadd.f32 %v381, %v382
    %v384 = vmul.f32 %v383, 0.125
    %v385 = vadd.f32 %v384, 1e-05
    %v386 = vrsqrt.pop %v385
    %v387 = vmul.f32 %v367, %v386
    %v388 = vlaneseq
    %v389 = vshrl.u32 %v388, 7
    %v390 = vsub.s32 0, %v389
    %v391 = vrot.slane %v387, %v390
    %v392 = vmul.f32 %v376, %v391
    %v393 = vlaneseq
    %v394 = vshrl.u32 %v393, 7
    %v395 = vsub.s32 0, %v394
    %v396 = vrot.slane %v368, %v395
    %v397 = vadd.f32 %v392, %v396
    %v398 = vmax.f32 %v397, 0.0
    %v399 = vld [vmem:[#allocation5 + $0x120] sm:$0xff]
    %v400 = vld [vmem:[#allocation5 + $0x128] sm:$0xff]
    %v401 = vld [vmem:[#allocation5 + $0x130] sm:$0xff]
    %v402 = vld [vmem:[#allocation5 + $0x138] sm:$0xff]
    %v403 = vld [vmem:[#allocation5 + $0x140] sm:$0xff]
    %v404 = vld [vmem:[#allocation5 + $0x148] sm:$0xff]
    %v405 = vld [vmem:[#allocation5 + $0x150] sm:$0xff]
    %v406 = vld [vmem:[#allocation5 + $0x158] sm:$0xff]
    %v407 = vld [vmem:[#allocation5 + $0x160] sm:$0xff]
    %v408 = vld [vmem:[#allocation5 + $0x168] sm:$0xff]
    %v409 = vld [vmem:[#allocation5 + $0x170] sm:$0xff]
    %v410 = vld [vmem:[#allocation5 + $0x178] sm:$0xff]
    %v411 = vld [vmem:[#allocation5 + $0x180] sm:$0xff]
    %v412 = vld [vmem:[#allocation5 + $0x188] sm:$0xff]
    %v413 = vld [vmem:[#allocation5 + $0x190] sm:$0xff]
    %v414 = vld [vmem:[#allocation5 + $0x198] sm:$0xff]
    %v415 = vld [vmem:[#allocation7 + $0x6] sm:$0x1]
    %v416 = vlaneseq
    %v417 = vshrl.u32 %v416, 7
    %v418 = vsub.s32 0, %v417
    %v419 = vrot.slane %v415, %v418
    %420 = vmatprep.subr.mxu0 0.0
    %421 = vmatpush1.msra.mxu0 %v399
    %422 = vmatprep.subr.mxu0 0.0
    %423 = vmatpush1.msra.mxu0 %v400
    %424 = vmatprep.subr.mxu0 0.0
    %425 = vmatpush1.msra.mxu0 %v401
    %426 = vmatprep.subr.mxu0 0.0
    %427 = vmatpush1.msra.mxu0 %v402
    %428 = vmatprep.subr.mxu0 0.0
    %429 = vmatpush1.msra.mxu0 %v403
    %430 = vmatprep.subr.mxu0 0.0
    %431 = vmatpush1.msra.mxu0 %v404
    %432 = vmatprep.subr.mxu0 0.0
    %433 = vmatpush1.msra.mxu0 %v405
    %434 = vmatprep.subr.mxu0 0.0
    %435 = vmatpush1.msra.mxu0 %v406
    %436 = vmatprep.subr.mxu0 0.0
    %437 = vmatpush1.msra.mxu0 %v407
    %438 = vmatprep.subr.mxu0 0.0
    %439 = vmatpush1.msra.mxu0 %v408
    %440 = vmatprep.subr.mxu0 0.0
    %441 = vmatpush1.msra.mxu0 %v409
    %442 = vmatprep.subr.mxu0 0.0
    %443 = vmatpush1.msra.mxu0 %v410
    %444 = vmatprep.subr.mxu0 0.0
    %445 = vmatpush1.msra.mxu0 %v411
    %446 = vmatprep.subr.mxu0 0.0
    %447 = vmatpush1.msra.mxu0 %v412
    %448 = vmatprep.subr.mxu0 0.0
    %449 = vmatpush1.msra.mxu0 %v413
    %450 = vmatprep.subr.mxu0 0.0
    %451 = vmatpush1.msra.mxu0 %v414
    %452 = vmatprep.subr.mxu0 0.0
    %453 = vmatpush1.msra.mxu0 0.0
    %454 = vmatprep.subr.mxu0 0.0
    %455 = vmatpush1.msra.mxu0 0.0
    %456 = vmatprep.subr.mxu0 0.0
    %457 = vmatpush1.msra.mxu0 0.0
    %458 = vmatprep.subr.mxu0 0.0
    %459 = vmatpush1.msra.mxu0 0.0
    %460 = vmatprep.subr.mxu0 0.0
    %461 = vmatpush1.msra.mxu0 0.0
    %462 = vmatprep.subr.mxu0 0.0
    %463 = vmatpush1.msra.mxu0 0.0
    %464 = vmatprep.subr.mxu0 0.0
    %465 = vmatpush1.msra.mxu0 0.0
    %466 = vmatprep.subr.mxu0 0.0
    %467 = vmatpush1.msra.mxu0 0.0
    %468 = vmatprep.subr.mxu0 0.0
    %469 = vmatpush1.msra.mxu0 0.0
    %470 = vmatprep.subr.mxu0 0.0
    %471 = vmatpush1.msra.mxu0 0.0
    %472 = vmatprep.subr.mxu0 0.0
    %473 = vmatpush1.msra.mxu0 0.0
    %474 = vmatprep.subr.mxu0 0.0
    %475 = vmatpush1.msra.mxu0 0.0
    %476 = vmatprep.subr.mxu0 0.0
    %477 = vmatpush1.msra.mxu0 0.0
    %478 = vmatprep.subr.mxu0 0.0
    %479 = vmatpush1.msra.mxu0 0.0
    %480 = vmatprep.subr.mxu0 0.0
    %481 = vmatpush1.msra.mxu0 0.0
    %482 = vmatprep.subr.mxu0 0.0
    %483 = vmatpush1.msra.mxu0 0.0
    %484 = vmatprep.mubr.f32.mxu0 0.0
    %485 = vmatmul.mubr.f32.gmra.mrb[0].mxu0 %v398
    %v486 = vpop.f32.mrb[0].mxu0
    %v487 = vadd.f32 %v419, %v486
    %v488 = vpop.f32.mrb[0].mxu0
    %489 = vdwg.mxu0
    %v490 = vxor.u32 %v487, 2147483648
    %v491 = vmul.f32 %v490, 1.442695
    %v492 = vpow.pop %v491
    %v493 = vadd.f32 %v492, 1.0
    %v494 = vrcp.pop %v493
    %v495 = vmul.f32 1.0, %v494
    %vm496 = vcmask 64512
    %497 = vst.msk [vmem:[#allocation8] sm:$0xff] %vm496, %v495
    // Predicated region
    $region26: #{tpu_custom_call.1} parent=1 // pred_check
      _
    $region27: #{tpu_custom_call.1} parent=1 // pred_check_branch
      %499 = sbr.rel (0) target = $region29
    $region28: #{tpu_custom_call.1} parent=1 // pred_region
      %s501 = ssub.s32 128, 128
      %502 = vsyncadd [#allocation4], %s501
      %s504 = sshll.u32 [#allocation8], 4
      %s505 = int_to_ptr.vmem [resolvable:$true] %s504
      %507 = dma.vmem_to_hbm [thread:$0]  %s505, 128, %s3, [#allocation4]
    $region29: #{tpu_custom_call.1} parent=1 // pred_fallthru
      _
    // Predicated region
    $region30: #{tpu_custom_call.1} parent=1 // pred_check
      _
    $region31: #{tpu_custom_call.1} parent=1 // pred_check_branch
      %509 = sbr.rel (0) target = $region33
    $region32: #{tpu_custom_call.1} parent=1 // pred_region
      %510 = dma.done [#allocation4], 128
    $region33: #{tpu_custom_call.1} parent=1 // pred_fallthru
      _
    %511 = vsyncpa [#allocation3], 1
    %512 = vsyncpa [#allocation6], 1
    %513 = vsyncpa [#allocation4], 1

</llo_original>
